<compile_context>
chip_gen: v5e
topology: v5e:2x2
jax: 0.10.0
libtpu: 0.0.40
codegen_flags: <defaults>
</compile_context>

<pallas_src>
from functools import partial

import jax
import jax.numpy as jnp
from jax.experimental import pallas as pl
from jax.experimental.pallas import tpu as pltpu

LN_EPS = 1e-5          # torch.nn.LayerNorm default
NEG_INF = -1e9         # bias of padded action columns -> softmax prob ~0
D_HID = 256
D_IN_PAD = 256         # 149 -> 256: aligned K for the first matmul
N_OUT_PAD = 128        # 48  -> 128: minimum lane-dense output width
MAX_TILE_B = 512       # large tiles amortize the ~0.35us per-grid-step overhead
B_ALIGN = 16           # bf16 sublane packing granule


# ----------------------------------------------------------------------------- kernel
def _linear_bf16(h, w_ref, bias):
    """bf16 MXU matmul with f32 accumulation; bias add in f32."""
    return jnp.dot(h.astype(jnp.bfloat16), w_ref[...],
                   preferred_element_type=jnp.float32) + bias


def _relu_layernorm(h):
    """ReLU then single-pass LayerNorm (affine already folded into next Linear)."""
    h = jnp.maximum(h, 0.0)
    inv_d = 1.0 / h.shape[-1]
    s1 = jnp.sum(h, axis=-1, keepdims=True)
    s2 = jnp.sum(h * h, axis=-1, keepdims=True)
    mu = s1 * inv_d
    var = s2 * inv_d - mu * mu
    return (h - mu) * jax.lax.rsqrt(var + LN_EPS)


def dqn_kernel(x_ref,                       # [TILE_B, 256] bf16
               w1_ref, w2_ref, w3_ref,      # bf16 [256, 256] (affine-folded)
               wo_ref,                      # bf16 [256, 128] (affine-folded, padded)
               bh_ref,                      # f32  [3, 256]  stacked hidden biases
               bo_ref,                      # f32  [1, 128]  output bias (-1e9 pad)
               out_ref):                    # f32  [TILE_B, 128]
    h = _relu_layernorm(_linear_bf16(x_ref[...], w1_ref, bh_ref[0:1, :]))
    h = _relu_layernorm(_linear_bf16(h, w2_ref, bh_ref[1:2, :]))
    h = _relu_layernorm(_linear_bf16(h, w3_ref, bh_ref[2:3, :]))

    # output Linear + Softmax(dim=-1); padded columns carry -1e9 bias -> exp = 0
    logits = _linear_bf16(h, wo_ref, bo_ref[...])
    m = jnp.max(logits, axis=-1, keepdims=True)
    e = jnp.exp(logits - m)
    denom = jnp.sum(e, axis=-1, keepdims=True)
    out_ref[...] = e * (1.0 / denom)        # exact reciprocal: rows sum to ~1


# ----------------------------------------------------------------------------- wrapper
def _batch_tiling(B):
    """Pick (tile, num_blocks, padded_batch).

    Big tiles (<=512) amortize per-grid-step overhead; tiny batches only pad to
    16 rows; mid/large batches get >= 2 grid steps so both v7x TensorCores get
    work on the 'parallel' axis (harmless on single-core v5e/v6e)."""
    b = max(B_ALIGN, ((B + B_ALIGN - 1) // B_ALIGN) * B_ALIGN)
    nb = max(1, (b + MAX_TILE_B - 1) // MAX_TILE_B)
    if nb < 2 and b >= 4 * B_ALIGN:
        nb = 2
    tile = (((b + nb - 1) // nb) + B_ALIGN - 1) // B_ALIGN * B_ALIGN
    return tile, nb, tile * nb


@partial(jax.jit, static_argnames=("n_actions",))
def dqn_forward_pallas(x, kparams, n_actions):
    """x: [B, n_input] f32.  kparams: output of fold_and_pad_params.

    Returns softmax probabilities [B, n_actions] (f32)."""
    w1, w2, w3, wo, bh, bo = kparams
    B, d_in = x.shape
    tile, nb, Bp = _batch_tiling(B)

    # single fused pad+cast pass; bf16 halves the dominant activation DMA
    xp = jnp.pad(x.astype(jnp.bfloat16), ((0, Bp - B), (0, D_IN_PAD - d_in)))

    x_spec = pl.BlockSpec((tile, D_IN_PAD), lambda i: (i, 0))
    const2d = lambda i: (0, 0)      # params stay VMEM-resident across batch tiles
    in_specs = [x_spec] + [pl.BlockSpec(p.shape, const2d)
                           for p in (w1, w2, w3, wo, bh, bo)]
    out_spec = pl.BlockSpec((tile, N_OUT_PAD), lambda i: (i, 0))

    flops = 2 * Bp * (D_IN_PAD * D_HID + 2 * D_HID * D_HID + D_HID * N_OUT_PAD)
    transcendentals = Bp * (N_OUT_PAD + 3)
    bytes_accessed = int(sum(int(p.size) * p.dtype.itemsize for p in kparams)
                         + Bp * D_IN_PAD * 2 + Bp * N_OUT_PAD * 4)

    out_padded = pl.pallas_call(
        dqn_kernel,
        out_shape=jax.ShapeDtypeStruct((Bp, N_OUT_PAD), jnp.float32),
        grid=(nb,),
        in_specs=in_specs,
        out_specs=out_spec,
        compiler_params=pltpu.CompilerParams(
            dimension_semantics=("parallel",)),
        cost_estimate=pl.CostEstimate(flops=flops,
                                      transcendentals=transcendentals,
                                      bytes_accessed=bytes_accessed),
    )(xp, w1, w2, w3, wo, bh, bo)

    return out_padded[:B, :n_actions]


# ----------------------------------------------------------------------------- params
def init_dqn_params(key, n_input, n_actions, hidden_dims=(D_HID, D_HID, D_HID)):
    """f32 parameters with the PyTorch module's semantics (weights stored [in, out],
    Linear init U(+-1/sqrt(fan_in))). LayerNorm affine is perturbed away from the
    torch default (1, 0) so the inference-time fold below is actually exercised;
    the forward formula is identical."""
    raw = {"w": [], "b": [], "gamma": [], "beta": []}
    cur = n_input
    for dim in hidden_dims:
        key, kw, kb, kg, ke = jax.random.split(key, 5)
        bound = cur ** -0.5
        raw["w"].append(jax.random.uniform(kw, (cur, dim), jnp.float32, -bound, bound))
        raw["b"].append(jax.random.uniform(kb, (dim,), jnp.float32, -bound, bound))
        raw["gamma"].append(1.0 + 0.1 * jax.random.normal(kg, (dim,), jnp.float32))
        raw["beta"].append(0.05 * jax.random.normal(ke, (dim,), jnp.float32))
        cur = dim
    key, kw, kb = jax.random.split(key, 3)
    bound = cur ** -0.5
    raw["wo"] = jax.random.uniform(kw, (cur, n_actions), jnp.float32, -bound, bound)
    raw["bo"] = jax.random.uniform(kb, (n_actions,), jnp.float32, -bound, bound)
    return raw


def fold_and_pad_params(raw, n_input, n_actions):
    """Inference-time parameter transform for the kernel:
      * fold each LayerNorm affine into the NEXT Linear:
            (z*g + be) @ W + b  ==  z @ (diag(g) @ W) + (be @ W + b)
      * zero-pad W1's input dim (149->256) and Wo's action dim (48->128);
        padded action columns get bias -1e9 so their softmax prob is ~0
      * cast weights to bf16 for the MXU (biases stay f32)
      * stack the three hidden biases into one [3, 256] array."""
    w1, w2, w3 = raw["w"]
    b1, b2, b3 = (v.reshape(1, -1) for v in raw["b"])
    g1, g2, g3 = raw["gamma"]
    be1, be2, be3 = (v.reshape(1, -1) for v in raw["beta"])
    wo, bo = raw["wo"], raw["bo"].reshape(1, -1)

    w2f = w2 * g1.reshape(-1, 1)
    b2f = be1 @ w2 + b2
    w3f = w3 * g2.reshape(-1, 1)
    b3f = be2 @ w3 + b3
    wof = wo * g3.reshape(-1, 1)
    bof = be3 @ wo + bo

    w1p = jnp.zeros((D_IN_PAD, D_HID), jnp.float32).at[:n_input, :].set(w1)
    wop = jnp.zeros((D_HID, N_OUT_PAD), jnp.float32).at[:, :n_actions].set(wof)
    bop = jnp.full((1, N_OUT_PAD), NEG_INF, jnp.float32).at[:, :n_actions].set(bof)
    bh = jnp.concatenate([b1, b2f, b3f], axis=0)              # [3, 256] f32

    return (w1p.astype(jnp.bfloat16), w2f.astype(jnp.bfloat16),
            w3f.astype(jnp.bfloat16), wop.astype(jnp.bfloat16), bh, bop)


# ----------------------------------------------------------------------------- refs
def dqn_forward_ref_kernelmath(x, kparams, n_actions):
    """Pure-JAX mirror of the kernel's math (folded params, bf16 matmuls)."""
    w1, w2, w3, wo, bh, bo = kparams
    xp = jnp.pad(x.astype(jnp.bfloat16), ((0, 0), (0, D_IN_PAD - x.shape[1])))

    def lin(h, w, b):
        return jnp.dot(h.astype(jnp.bfloat16), w,
                       preferred_element_type=jnp.float32) + b

    def rln(h):
        h = jnp.maximum(h, 0.0)
        mu = jnp.mean(h, axis=-1, keepdims=True)
        var = jnp.mean(h * h, axis=-1, keepdims=True) - mu * mu
        return (h - mu) * jax.lax.rsqrt(var + LN_EPS)

    h = rln(lin(xp, w1, bh[0:1]))
    h = rln(lin(h, w2, bh[1:2]))
    h = rln(lin(h, w3, bh[2:3]))
    logits = lin(h, wo, bo)
    return jax.nn.softmax(logits, axis=-1)[:, :n_actions]


def dqn_forward_torch_ref(x, raw):
    """Full-precision reference with the original (unfolded) PyTorch semantics."""
    h = x
    for w, b, g, be in zip(raw["w"], raw["b"], raw["gamma"], raw["beta"]):
        h = jnp.maximum(h @ w + b, 0.0)
        mu = jnp.mean(h, axis=-1, keepdims=True)
        var = jnp.mean((h - mu) ** 2, axis=-1, keepdims=True)
        h = (h - mu) / jnp.sqrt(var + LN_EPS) * g + be
    logits = h @ raw["wo"] + raw["bo"]
    return jax.nn.softmax(logits, axis=-1)


# TODO(synk): experience replay, eps-greedy action selection, the Adam/MSE
# training loop and the target-network EMA are host-side control flow with no
# Pallas-kernel equivalent; only the DQN forward pass is implemented here.

if __name__ == "__main__":
    # Shapes implied by the module: input_dim = 149 (state_to_input_array),
    # default hidden_dims = [256, 256, 256], n_actions small; small batch.
    B, N_INPUT, N_ACTIONS = 4, 149, 48

    key = jax.random.PRNGKey(0)
    key, kx = jax.random.split(key)
    x = jax.random.normal(kx, (B, N_INPUT), jnp.float32)

    raw = init_dqn_params(key, N_INPUT, N_ACTIONS)
    kparams = fold_and_pad_params(raw, N_INPUT, N_ACTIONS)

    out = jax.block_until_ready(dqn_forward_pallas(x, kparams, N_ACTIONS))
    assert out.shape == (B, N_ACTIONS)

    # (1) tight check against a pure-JAX mirror of the kernel's exact math
    ref_k = dqn_forward_ref_kernelmath(x, kparams, N_ACTIONS)
    assert jnp.allclose(out, ref_k, atol=2e-3, rtol=2e-3), \
        "Pallas output mismatch vs kernel-math JAX reference"

    # (2) looser check against the f32, unfolded PyTorch-semantics forward
    ref_t = dqn_forward_torch_ref(x, raw)
    assert jnp.allclose(out, ref_t[:, :N_ACTIONS], atol=1e-2, rtol=1e-2), \
        "Pallas output mismatch vs f32 PyTorch-semantics reference"

    # (3) softmax rows sum to ~1 (padded action columns contribute ~0; exact
    #     f32 reciprocal in the kernel keeps this within f32 rounding)
    assert jnp.allclose(jnp.sum(out, axis=-1),
                        jnp.ones((B,), jnp.float32), atol=1e-3)

    print("KERNEL_OK")
</pallas_src>

<mosaic_0001>
module attributes {stable_mosaic.version = 11 : i64} {
  func.func @dqn_kernel(%arg0: i32, %arg1: memref<16x256xbf16, #tpu.memory_space<vmem>>, %arg2: memref<256x256xbf16, #tpu.memory_space<vmem>>, %arg3: memref<256x256xbf16, #tpu.memory_space<vmem>>, %arg4: memref<256x256xbf16, #tpu.memory_space<vmem>>, %arg5: memref<256x128xbf16, #tpu.memory_space<vmem>>, %arg6: memref<3x256xf32, #tpu.memory_space<vmem>>, %arg7: memref<1x128xf32, #tpu.memory_space<vmem>>, %arg8: memref<16x128xf32, #tpu.memory_space<vmem>>) attributes {dimension_semantics = [#tpu.dimension_semantics<parallel>], iteration_bounds = array<i64: 1>, scalar_prefetch = 0 : i64, scratch_operands = 0 : i64, tpu.core_type = #tpu.core_type<tc>, window_params = [{transform_indices = @transform_0, window_bounds = array<i64: 16, 256>}, {pipeline_mode = #tpu.pipeline_mode<synchronous>, transform_indices = @transform_1, window_bounds = array<i64: 256, 256>}, {pipeline_mode = #tpu.pipeline_mode<synchronous>, transform_indices = @transform_2, window_bounds = array<i64: 256, 256>}, {pipeline_mode = #tpu.pipeline_mode<synchronous>, transform_indices = @transform_3, window_bounds = array<i64: 256, 256>}, {pipeline_mode = #tpu.pipeline_mode<synchronous>, transform_indices = @transform_4, window_bounds = array<i64: 256, 128>}, {pipeline_mode = #tpu.pipeline_mode<synchronous>, transform_indices = @transform_5, window_bounds = array<i64: 3, 256>}, {pipeline_mode = #tpu.pipeline_mode<synchronous>, transform_indices = @transform_6, window_bounds = array<i64: 1, 128>}, {transform_indices = @transform_7, window_bounds = array<i64: 16, 128>}]} {
    %c0 = arith.constant 0 : index
    %c0_0 = arith.constant 0 : index
    %0 = vector.load %arg1[%c0, %c0_0] : memref<16x256xbf16, #tpu.memory_space<vmem>>, vector<16x256xbf16>
    %c0_1 = arith.constant 0 : index
    %c0_2 = arith.constant 0 : index
    %1 = vector.load %arg6[%c0_1, %c0_2] : memref<3x256xf32, #tpu.memory_space<vmem>>, vector<1x256xf32>
    %c0_3 = arith.constant 0 : index
    %c0_4 = arith.constant 0 : index
    %2 = vector.load %arg2[%c0_3, %c0_4] : memref<256x256xbf16, #tpu.memory_space<vmem>>, vector<256x256xbf16>
    %cst = arith.constant dense<0.000000e+00> : vector<16x256xf32>
    %3 = tpu.matmul %0, %2, %cst {dimension_numbers = #tpu.dot_dimension_numbers<[1], [0], [0], [1], [0, 0, 1, 1], [], []>} : vector<16x256xbf16>, vector<256x256xbf16>, vector<16x256xf32> -> vector<16x256xf32>
    %4 = vector.broadcast %1 : vector<1x256xf32> to vector<16x256xf32>
    %5 = arith.addf %3, %4 : vector<16x256xf32>
    %cst_5 = arith.constant 0.000000e+00 : f32
    %6 = vector.broadcast %cst_5 : f32 to vector<16x256xf32>
    %7 = arith.maximumf %5, %6 : vector<16x256xf32>
    %cst_6 = arith.constant dense<0.000000e+00> : vector<16xf32>
    %8 = vector.multi_reduction <add>, %7, %cst_6 [1] : vector<16x256xf32> to vector<16xf32>
    %9 = vector.shape_cast %8 : vector<16xf32> to vector<16x1xf32>
    %10 = arith.mulf %7, %7 : vector<16x256xf32>
    %cst_7 = arith.constant dense<0.000000e+00> : vector<16xf32>
    %11 = vector.multi_reduction <add>, %10, %cst_7 [1] : vector<16x256xf32> to vector<16xf32>
    %12 = vector.shape_cast %11 : vector<16xf32> to vector<16x1xf32>
    %cst_8 = arith.constant 3.906250e-03 : f32
    %13 = vector.broadcast %cst_8 : f32 to vector<16x1xf32>
    %14 = arith.mulf %9, %13 : vector<16x1xf32>
    %cst_9 = arith.constant 3.906250e-03 : f32
    %15 = vector.broadcast %cst_9 : f32 to vector<16x1xf32>
    %16 = arith.mulf %12, %15 : vector<16x1xf32>
    %17 = arith.mulf %14, %14 : vector<16x1xf32>
    %18 = arith.subf %16, %17 : vector<16x1xf32>
    %19 = vector.broadcast %14 : vector<16x1xf32> to vector<16x256xf32>
    %20 = arith.subf %7, %19 : vector<16x256xf32>
    %cst_10 = arith.constant 9.99999974E-6 : f32
    %21 = vector.broadcast %cst_10 : f32 to vector<16x1xf32>
    %22 = arith.addf %18, %21 : vector<16x1xf32>
    %23 = math.rsqrt %22 : vector<16x1xf32>
    %24 = vector.broadcast %23 : vector<16x1xf32> to vector<16x256xf32>
    %25 = arith.mulf %20, %24 : vector<16x256xf32>
    %c1 = arith.constant 1 : index
    %c0_11 = arith.constant 0 : index
    %26 = vector.load %arg6[%c1, %c0_11] : memref<3x256xf32, #tpu.memory_space<vmem>>, vector<1x256xf32>
    %27 = arith.truncf %25 : vector<16x256xf32> to vector<16x256xbf16>
    %c0_12 = arith.constant 0 : index
    %c0_13 = arith.constant 0 : index
    %28 = vector.load %arg3[%c0_12, %c0_13] : memref<256x256xbf16, #tpu.memory_space<vmem>>, vector<256x256xbf16>
    %cst_14 = arith.constant dense<0.000000e+00> : vector<16x256xf32>
    %29 = tpu.matmul %27, %28, %cst_14 {dimension_numbers = #tpu.dot_dimension_numbers<[1], [0], [0], [1], [0, 0, 1, 1], [], []>} : vector<16x256xbf16>, vector<256x256xbf16>, vector<16x256xf32> -> vector<16x256xf32>
    %30 = vector.broadcast %26 : vector<1x256xf32> to vector<16x256xf32>
    %31 = arith.addf %29, %30 : vector<16x256xf32>
    %cst_15 = arith.constant 0.000000e+00 : f32
    %32 = vector.broadcast %cst_15 : f32 to vector<16x256xf32>
    %33 = arith.maximumf %31, %32 : vector<16x256xf32>
    %cst_16 = arith.constant dense<0.000000e+00> : vector<16xf32>
    %34 = vector.multi_reduction <add>, %33, %cst_16 [1] : vector<16x256xf32> to vector<16xf32>
    %35 = vector.shape_cast %34 : vector<16xf32> to vector<16x1xf32>
    %36 = arith.mulf %33, %33 : vector<16x256xf32>
    %cst_17 = arith.constant dense<0.000000e+00> : vector<16xf32>
    %37 = vector.multi_reduction <add>, %36, %cst_17 [1] : vector<16x256xf32> to vector<16xf32>
    %38 = vector.shape_cast %37 : vector<16xf32> to vector<16x1xf32>
    %cst_18 = arith.constant 3.906250e-03 : f32
    %39 = vector.broadcast %cst_18 : f32 to vector<16x1xf32>
    %40 = arith.mulf %35, %39 : vector<16x1xf32>
    %cst_19 = arith.constant 3.906250e-03 : f32
    %41 = vector.broadcast %cst_19 : f32 to vector<16x1xf32>
    %42 = arith.mulf %38, %41 : vector<16x1xf32>
    %43 = arith.mulf %40, %40 : vector<16x1xf32>
    %44 = arith.subf %42, %43 : vector<16x1xf32>
    %45 = vector.broadcast %40 : vector<16x1xf32> to vector<16x256xf32>
    %46 = arith.subf %33, %45 : vector<16x256xf32>
    %cst_20 = arith.constant 9.99999974E-6 : f32
    %47 = vector.broadcast %cst_20 : f32 to vector<16x1xf32>
    %48 = arith.addf %44, %47 : vector<16x1xf32>
    %49 = math.rsqrt %48 : vector<16x1xf32>
    %50 = vector.broadcast %49 : vector<16x1xf32> to vector<16x256xf32>
    %51 = arith.mulf %46, %50 : vector<16x256xf32>
    %c2 = arith.constant 2 : index
    %c0_21 = arith.constant 0 : index
    %52 = vector.load %arg6[%c2, %c0_21] : memref<3x256xf32, #tpu.memory_space<vmem>>, vector<1x256xf32>
    %53 = arith.truncf %51 : vector<16x256xf32> to vector<16x256xbf16>
    %c0_22 = arith.constant 0 : index
    %c0_23 = arith.constant 0 : index
    %54 = vector.load %arg4[%c0_22, %c0_23] : memref<256x256xbf16, #tpu.memory_space<vmem>>, vector<256x256xbf16>
    %cst_24 = arith.constant dense<0.000000e+00> : vector<16x256xf32>
    %55 = tpu.matmul %53, %54, %cst_24 {dimension_numbers = #tpu.dot_dimension_numbers<[1], [0], [0], [1], [0, 0, 1, 1], [], []>} : vector<16x256xbf16>, vector<256x256xbf16>, vector<16x256xf32> -> vector<16x256xf32>
    %56 = vector.broadcast %52 : vector<1x256xf32> to vector<16x256xf32>
    %57 = arith.addf %55, %56 : vector<16x256xf32>
    %cst_25 = arith.constant 0.000000e+00 : f32
    %58 = vector.broadcast %cst_25 : f32 to vector<16x256xf32>
    %59 = arith.maximumf %57, %58 : vector<16x256xf32>
    %cst_26 = arith.constant dense<0.000000e+00> : vector<16xf32>
    %60 = vector.multi_reduction <add>, %59, %cst_26 [1] : vector<16x256xf32> to vector<16xf32>
    %61 = vector.shape_cast %60 : vector<16xf32> to vector<16x1xf32>
    %62 = arith.mulf %59, %59 : vector<16x256xf32>
    %cst_27 = arith.constant dense<0.000000e+00> : vector<16xf32>
    %63 = vector.multi_reduction <add>, %62, %cst_27 [1] : vector<16x256xf32> to vector<16xf32>
    %64 = vector.shape_cast %63 : vector<16xf32> to vector<16x1xf32>
    %cst_28 = arith.constant 3.906250e-03 : f32
    %65 = vector.broadcast %cst_28 : f32 to vector<16x1xf32>
    %66 = arith.mulf %61, %65 : vector<16x1xf32>
    %cst_29 = arith.constant 3.906250e-03 : f32
    %67 = vector.broadcast %cst_29 : f32 to vector<16x1xf32>
    %68 = arith.mulf %64, %67 : vector<16x1xf32>
    %69 = arith.mulf %66, %66 : vector<16x1xf32>
    %70 = arith.subf %68, %69 : vector<16x1xf32>
    %71 = vector.broadcast %66 : vector<16x1xf32> to vector<16x256xf32>
    %72 = arith.subf %59, %71 : vector<16x256xf32>
    %cst_30 = arith.constant 9.99999974E-6 : f32
    %73 = vector.broadcast %cst_30 : f32 to vector<16x1xf32>
    %74 = arith.addf %70, %73 : vector<16x1xf32>
    %75 = math.rsqrt %74 : vector<16x1xf32>
    %76 = vector.broadcast %75 : vector<16x1xf32> to vector<16x256xf32>
    %77 = arith.mulf %72, %76 : vector<16x256xf32>
    %c0_31 = arith.constant 0 : index
    %c0_32 = arith.constant 0 : index
    %78 = vector.load %arg7[%c0_31, %c0_32] : memref<1x128xf32, #tpu.memory_space<vmem>>, vector<1x128xf32>
    %79 = arith.truncf %77 : vector<16x256xf32> to vector<16x256xbf16>
    %c0_33 = arith.constant 0 : index
    %c0_34 = arith.constant 0 : index
    %80 = vector.load %arg5[%c0_33, %c0_34] : memref<256x128xbf16, #tpu.memory_space<vmem>>, vector<256x128xbf16>
    %cst_35 = arith.constant dense<0.000000e+00> : vector<16x128xf32>
    %81 = tpu.matmul %79, %80, %cst_35 {dimension_numbers = #tpu.dot_dimension_numbers<[1], [0], [0], [1], [0, 0, 1, 1], [], []>} : vector<16x256xbf16>, vector<256x128xbf16>, vector<16x128xf32> -> vector<16x128xf32>
    %82 = vector.broadcast %78 : vector<1x128xf32> to vector<16x128xf32>
    %83 = arith.addf %81, %82 : vector<16x128xf32>
    %cst_36 = arith.constant dense<0xFF800000> : vector<16xf32>
    %84 = vector.multi_reduction <maximumf>, %83, %cst_36 [1] : vector<16x128xf32> to vector<16xf32>
    %85 = vector.shape_cast %84 : vector<16xf32> to vector<16x1xf32>
    %86 = vector.broadcast %85 : vector<16x1xf32> to vector<16x128xf32>
    %87 = arith.subf %83, %86 : vector<16x128xf32>
    %88 = math.exp %87 : vector<16x128xf32>
    %cst_37 = arith.constant dense<0.000000e+00> : vector<16xf32>
    %89 = vector.multi_reduction <add>, %88, %cst_37 [1] : vector<16x128xf32> to vector<16xf32>
    %90 = vector.shape_cast %89 : vector<16xf32> to vector<16x1xf32>
    %cst_38 = arith.constant 1.000000e+00 : f32
    %91 = vector.broadcast %cst_38 : f32 to vector<16x1xf32>
    %92 = arith.divf %91, %90 : vector<16x1xf32>
    %93 = vector.broadcast %92 : vector<16x1xf32> to vector<16x128xf32>
    %94 = arith.mulf %88, %93 : vector<16x128xf32>
    %c0_39 = arith.constant 0 : index
    %c0_40 = arith.constant 0 : index
    %95 = vector.load %arg8[%c0_39, %c0_40] : memref<16x128xf32, #tpu.memory_space<vmem>>, vector<16x128xf32>
    tpu.vector_store %arg8[%c0_39, %c0_40], %94 {strides = array<i32>} : memref<16x128xf32, #tpu.memory_space<vmem>>, vector<16x128xf32>,
    return
  }
  func.func @transform_0(%arg0: i32) -> (i32, i32) {
    %c0_i32 = arith.constant 0 : i32
    %c0_i32_0 = arith.constant 0 : i32
    return %arg0, %c0_i32 : i32, i32
  }
  func.func @transform_1(%arg0: i32) -> (i32, i32) {
    %c0_i32 = arith.constant 0 : i32
    %c0_i32_0 = arith.constant 0 : i32
    %c0_i32_1 = arith.constant 0 : i32
    return %c0_i32, %c0_i32_0 : i32, i32
  }
  func.func @transform_2(%arg0: i32) -> (i32, i32) {
    %c0_i32 = arith.constant 0 : i32
    %c0_i32_0 = arith.constant 0 : i32
    %c0_i32_1 = arith.constant 0 : i32
    return %c0_i32, %c0_i32_0 : i32, i32
  }
  func.func @transform_3(%arg0: i32) -> (i32, i32) {
    %c0_i32 = arith.constant 0 : i32
    %c0_i32_0 = arith.constant 0 : i32
    %c0_i32_1 = arith.constant 0 : i32
    return %c0_i32, %c0_i32_0 : i32, i32
  }
  func.func @transform_4(%arg0: i32) -> (i32, i32) {
    %c0_i32 = arith.constant 0 : i32
    %c0_i32_0 = arith.constant 0 : i32
    %c0_i32_1 = arith.constant 0 : i32
    return %c0_i32, %c0_i32_0 : i32, i32
  }
  func.func @transform_5(%arg0: i32) -> (i32, i32) {
    %c0_i32 = arith.constant 0 : i32
    %c0_i32_0 = arith.constant 0 : i32
    %c0_i32_1 = arith.constant 0 : i32
    return %c0_i32, %c0_i32_0 : i32, i32
  }
  func.func @transform_6(%arg0: i32) -> (i32, i32) {
    %c0_i32 = arith.constant 0 : i32
    %c0_i32_0 = arith.constant 0 : i32
    %c0_i32_1 = arith.constant 0 : i32
    return %c0_i32, %c0_i32_0 : i32, i32
  }
  func.func @transform_7(%arg0: i32) -> (i32, i32) {
    %c0_i32 = arith.constant 0 : i32
    %c0_i32_0 = arith.constant 0 : i32
    return %arg0, %c0_i32 : i32, i32
  }
}

</mosaic_0001>

<llo_original>
// kernel: dqn_forward_pallas.1
$region0: #{dqn_forward_pallas.1}
  #allocation0 [shape = 'u32[]', space=smem, size = 0x4, offset = 0x4, fixed_abs, tag = 'smem constant byte address 0x4 - core index']
  #allocation1 [shape = 'u32[72,128]{1,0:T(1,128)}', space=vmem, size = 0x9000, scoped, tag = 'internal scratch']
  %s0 = inlined_call_operand.vmem [shape: bf16[16,256], index: 0, kind: input, shape index: {}]
  %s1 = inlined_call_operand.hbm [shape: bf16[256,256], index: 1, kind: input, shape index: {}]
  %s2 = inlined_call_operand.hbm [shape: bf16[256,256], index: 2, kind: input, shape index: {}]
  %s3 = inlined_call_operand.hbm [shape: bf16[256,256], index: 3, kind: input, shape index: {}]
  %s4 = inlined_call_operand.hbm [shape: bf16[256,128], index: 4, kind: input, shape index: {}]
  %s5 = inlined_call_operand.vmem [shape: f32[3,256], index: 5, kind: input, shape index: {}]
  %s6 = inlined_call_operand.vmem [shape: f32[1,128], index: 6, kind: input, shape index: {}]
  %s7 = inlined_call_operand.vmem [shape: f32[16,128], index: 7, kind: output, shape index: {}]
  %s8 = sld [smem:[#allocation0]]
  $region54: #{dqn_forward_pallas.1} parent=0
    _
  %s10 = ssub.s32 1, %s8
  %s11 = scalar_select 0, %s10, %s8
  $region1: #{dqn_forward_pallas.1} parent=0
    #allocation2 [shape = 'u8[131072]{0}', space=vmem, size = 0x20000, scoped, tag = 'input window, operand 1, single buffered']
    #allocation3 [shape = 's32[1]{0}', space=sflag, size = 0x4, scoped, tag = 'scoped memory for dqn_forward_pallas.1']
    #allocation4 [shape = 'u8[131072]{0}', space=vmem, size = 0x20000, scoped, tag = 'input window, operand 2, single buffered']
    #allocation5 [shape = 's32[1]{0}', space=sflag, size = 0x4, scoped, tag = 'scoped memory for dqn_forward_pallas.1']
    #allocation6 [shape = 'u8[131072]{0}', space=vmem, size = 0x20000, scoped, tag = 'input window, operand 3, single buffered']
    #allocation7 [shape = 'u8[65536]{0}', space=vmem, size = 0x10000, scoped, tag = 'input window, operand 4, single buffered']
    #allocation8 [shape = 's32[1]{0}', space=sflag, size = 0x4, scoped, tag = 'scoped memory for dqn_forward_pallas.1']
    %12 = vsyncpa [#allocation3], 0
    %13 = vsyncpa [#allocation5], 0
    %14 = vsyncpa [#allocation8], 0
    // Predicated region
    $region2: #{dqn_forward_pallas.1} parent=1 // pred_check
      _
    $region3: #{dqn_forward_pallas.1} parent=1 // pred_check_branch
      %16 = sbr.rel (0) target = $region5
    $region4: #{dqn_forward_pallas.1} parent=1 // pred_region
      _
    $region5: #{dqn_forward_pallas.1} parent=1 // pred_fallthru
      _
    // Predicated region
    $region6: #{dqn_forward_pallas.1} parent=1 // pred_check
      _
    $region7: #{dqn_forward_pallas.1} parent=1 // pred_check_branch
      %18 = sbr.rel (0) target = $region9
    $region8: #{dqn_forward_pallas.1} parent=1 // pred_region
      %20 = vsyncadd [#allocation3], 0
      %s21 = sshll.u32 %s1, 4
      %s22 = int_to_ptr.hbm [resolvable:$true] %s21
      %s23 = sshll.u32 [#allocation2], 4
      %s24 = int_to_ptr.vmem [resolvable:$true] %s23
      %29 = dma.hbm_to_vmem [thread:$0]  %s22, 4096, %s24, [#allocation3], 128, 128, 8
    $region9: #{dqn_forward_pallas.1} parent=1 // pred_fallthru
      _
    // Predicated region
    $region10: #{dqn_forward_pallas.1} parent=1 // pred_check
      _
    $region11: #{dqn_forward_pallas.1} parent=1 // pred_check_branch
      %31 = sbr.rel (0) target = $region13
    $region12: #{dqn_forward_pallas.1} parent=1 // pred_region
      %33 = vsyncadd [#allocation5], 0
      %s34 = sshll.u32 %s2, 4
      %s35 = int_to_ptr.hbm [resolvable:$true] %s34
      %s36 = sshll.u32 [#allocation4], 4
      %s37 = int_to_ptr.vmem [resolvable:$true] %s36
      %42 = dma.hbm_to_vmem [thread:$0]  %s35, 4096, %s37, [#allocation5], 128, 128, 8
    $region13: #{dqn_forward_pallas.1} parent=1 // pred_fallthru
      _
    // Predicated region
    $region14: #{dqn_forward_pallas.1} parent=1 // pred_check
      _
    $region15: #{dqn_forward_pallas.1} parent=1 // pred_check_branch
      %44 = sbr.rel (0) target = $region17
    $region16: #{dqn_forward_pallas.1} parent=1 // pred_region
      %46 = vsyncadd [#allocation5], 0
      %s47 = sshll.u32 %s3, 4
      %s48 = int_to_ptr.hbm [resolvable:$true] %s47
      %s49 = sshll.u32 [#allocation6], 4
      %s50 = int_to_ptr.vmem [resolvable:$true] %s49
      %55 = dma.hbm_to_vmem [thread:$0]  %s48, 4096, %s50, [#allocation5], 128, 128, 8
    $region17: #{dqn_forward_pallas.1} parent=1 // pred_fallthru
      _
    // Predicated region
    $region18: #{dqn_forward_pallas.1} parent=1 // pred_check
      _
    $region19: #{dqn_forward_pallas.1} parent=1 // pred_check_branch
      %57 = sbr.rel (0) target = $region21
    $region20: #{dqn_forward_pallas.1} parent=1 // pred_region
      %59 = vsyncadd [#allocation8], 0
      %s60 = sshll.u32 %s4, 4
      %s61 = int_to_ptr.hbm [resolvable:$true] %s60
      %s62 = sshll.u32 [#allocation7], 4
      %s63 = int_to_ptr.vmem [resolvable:$true] %s62
      %68 = dma.hbm_to_vmem [thread:$0]  %s61, 2048, %s63, [#allocation8], 64, 64, 4
    $region21: #{dqn_forward_pallas.1} parent=1 // pred_fallthru
      _
    // Predicated region
    $region22: #{dqn_forward_pallas.1} parent=1 // pred_check
      _
    $region23: #{dqn_forward_pallas.1} parent=1 // pred_check_branch
      %70 = sbr.rel (0) target = $region25
    $region24: #{dqn_forward_pallas.1} parent=1 // pred_region
      _
    $region25: #{dqn_forward_pallas.1} parent=1 // pred_fallthru
      _
    // Predicated region
    $region26: #{dqn_forward_pallas.1} parent=1 // pred_check
      _
    $region27: #{dqn_forward_pallas.1} parent=1 // pred_check_branch
      %72 = sbr.rel (0) target = $region29
    $region28: #{dqn_forward_pallas.1} parent=1 // pred_region
      _
    $region29: #{dqn_forward_pallas.1} parent=1 // pred_fallthru
      _
    // Predicated region
    $region30: #{dqn_forward_pallas.1} parent=1 // pred_check
      _
    $region31: #{dqn_forward_pallas.1} parent=1 // pred_check_branch
      %74 = sbr.rel (0) target = $region33
    $region32: #{dqn_forward_pallas.1} parent=1 // pred_region
      %76 = dma.done [#allocation3], 4096
    $region33: #{dqn_forward_pallas.1} parent=1 // pred_fallthru
      _
    // Predicated region
    $region34: #{dqn_forward_pallas.1} parent=1 // pred_check
      _
    $region35: #{dqn_forward_pallas.1} parent=1 // pred_check_branch
      %78 = sbr.rel (0) target = $region37
    $region36: #{dqn_forward_pallas.1} parent=1 // pred_region
      %80 = dma.done [#allocation5], 4096
    $region37: #{dqn_forward_pallas.1} parent=1 // pred_fallthru
      _
    // Predicated region
    $region38: #{dqn_forward_pallas.1} parent=1 // pred_check
      _
    $region39: #{dqn_forward_pallas.1} parent=1 // pred_check_branch
      %82 = sbr.rel (0) target = $region41
    $region40: #{dqn_forward_pallas.1} parent=1 // pred_region
      %84 = dma.done [#allocation5], 4096
    $region41: #{dqn_forward_pallas.1} parent=1 // pred_fallthru
      _
    // Predicated region
    $region42: #{dqn_forward_pallas.1} parent=1 // pred_check
      _
    $region43: #{dqn_forward_pallas.1} parent=1 // pred_check_branch
      %86 = sbr.rel (0) target = $region45
    $region44: #{dqn_forward_pallas.1} parent=1 // pred_region
      %88 = dma.done [#allocation8], 2048
    $region45: #{dqn_forward_pallas.1} parent=1 // pred_fallthru
      _
    %v89 = vld [vmem:[%s0] sm:$0xff]
    %v90 = vld [vmem:[%s0 + $0x8] sm:$0xff]
    %v91 = vld [vmem:[%s5] ss:$4 sm:$0x3]
    %v92 = vld [vmem:[#allocation2] sm:$0xff]
    %v93 = vld [vmem:[#allocation2 + $0x8] sm:$0xff]
    %v94 = vld [vmem:[#allocation2 + $0x10] sm:$0xff]
    %v95 = vld [vmem:[#allocation2 + $0x18] sm:$0xff]
    %v96 = vld [vmem:[#allocation2 + $0x20] sm:$0xff]
    %v97 = vld [vmem:[#allocation2 + $0x28] sm:$0xff]
    %v98 = vld [vmem:[#allocation2 + $0x30] sm:$0xff]
    %v99 = vld [vmem:[#allocation2 + $0x38] sm:$0xff]
    %v100 = vld [vmem:[#allocation2 + $0x40] sm:$0xff]
    %v101 = vld [vmem:[#allocation2 + $0x48] sm:$0xff]
    %v102 = vld [vmem:[#allocation2 + $0x50] sm:$0xff]
    %v103 = vld [vmem:[#allocation2 + $0x58] sm:$0xff]
    %v104 = vld [vmem:[#allocation2 + $0x60] sm:$0xff]
    %v105 = vld [vmem:[#allocation2 + $0x68] sm:$0xff]
    %v106 = vld [vmem:[#allocation2 + $0x70] sm:$0xff]
    %v107 = vld [vmem:[#allocation2 + $0x78] sm:$0xff]
    %v108 = vld [vmem:[#allocation2 + $0x80] sm:$0xff]
    %v109 = vld [vmem:[#allocation2 + $0x88] sm:$0xff]
    %v110 = vld [vmem:[#allocation2 + $0x90] sm:$0xff]
    %v111 = vld [vmem:[#allocation2 + $0x98] sm:$0xff]
    %v112 = vld [vmem:[#allocation2 + $0xa0] sm:$0xff]
    %v113 = vld [vmem:[#allocation2 + $0xa8] sm:$0xff]
    %v114 = vld [vmem:[#allocation2 + $0xb0] sm:$0xff]
    %v115 = vld [vmem:[#allocation2 + $0xb8] sm:$0xff]
    %v116 = vld [vmem:[#allocation2 + $0xc0] sm:$0xff]
    %v117 = vld [vmem:[#allocation2 + $0xc8] sm:$0xff]
    %v118 = vld [vmem:[#allocation2 + $0xd0] sm:$0xff]
    %v119 = vld [vmem:[#allocation2 + $0xd8] sm:$0xff]
    %v120 = vld [vmem:[#allocation2 + $0xe0] sm:$0xff]
    %v121 = vld [vmem:[#allocation2 + $0xe8] sm:$0xff]
    %v122 = vld [vmem:[#allocation2 + $0xf0] sm:$0xff]
    %v123 = vld [vmem:[#allocation2 + $0xf8] sm:$0xff]
    %v125 = vperm.slane %v91, 0
    %v126 = vperm.slane %v91, 1
    %v131 = vunpack.c.l.b16 %v89
    %v132 = vunpack.c.h.b16 %v89
    %v133 = vunpack.c.l.b16 %v90
    %v134 = vunpack.c.h.b16 %v90
    %v135 = vpack.c.b16 %v133, %v131
    %v136 = vpack.c.b16 %v134, %v132
    %v171 = vunpack.c.l.b16 %v92
    %v172 = vunpack.c.h.b16 %v92
    %v173 = vunpack.c.l.b16 %v93
    %v174 = vunpack.c.h.b16 %v93
    %v175 = vunpack.c.l.b16 %v94
    %v176 = vunpack.c.h.b16 %v94
    %v177 = vunpack.c.l.b16 %v95
    %v178 = vunpack.c.h.b16 %v95
    %v179 = vunpack.c.l.b16 %v96
    %v180 = vunpack.c.h.b16 %v96
    %v181 = vunpack.c.l.b16 %v97
    %v182 = vunpack.c.h.b16 %v97
    %v183 = vunpack.c.l.b16 %v98
    %v184 = vunpack.c.h.b16 %v98
    %v185 = vunpack.c.l.b16 %v99
    %v186 = vunpack.c.h.b16 %v99
    %v187 = vunpack.c.l.b16 %v100
    %v188 = vunpack.c.h.b16 %v100
    %v189 = vunpack.c.l.b16 %v101
    %v190 = vunpack.c.h.b16 %v101
    %v191 = vunpack.c.l.b16 %v102
    %v192 = vunpack.c.h.b16 %v102
    %v193 = vunpack.c.l.b16 %v103
    %v194 = vunpack.c.h.b16 %v103
    %v195 = vunpack.c.l.b16 %v104
    %v196 = vunpack.c.h.b16 %v104
    %v197 = vunpack.c.l.b16 %v105
    %v198 = vunpack.c.h.b16 %v105
    %v199 = vunpack.c.l.b16 %v106
    %v200 = vunpack.c.h.b16 %v106
    %v201 = vunpack.c.l.b16 %v107
    %v202 = vunpack.c.h.b16 %v107
    %v203 = vunpack.c.l.b16 %v108
    %v204 = vunpack.c.h.b16 %v108
    %v205 = vunpack.c.l.b16 %v109
    %v206 = vunpack.c.h.b16 %v109
    %v207 = vunpack.c.l.b16 %v110
    %v208 = vunpack.c.h.b16 %v110
    %v209 = vunpack.c.l.b16 %v111
    %v210 = vunpack.c.h.b16 %v111
    %v211 = vunpack.c.l.b16 %v112
    %v212 = vunpack.c.h.b16 %v112
    %v213 = vunpack.c.l.b16 %v113
    %v214 = vunpack.c.h.b16 %v113
    %v215 = vunpack.c.l.b16 %v114
    %v216 = vunpack.c.h.b16 %v114
    %v217 = vunpack.c.l.b16 %v115
    %v218 = vunpack.c.h.b16 %v115
    %v219 = vunpack.c.l.b16 %v116
    %v220 = vunpack.c.h.b16 %v116
    %v221 = vunpack.c.l.b16 %v117
    %v222 = vunpack.c.h.b16 %v117
    %v223 = vunpack.c.l.b16 %v118
    %v224 = vunpack.c.h.b16 %v118
    %v225 = vunpack.c.l.b16 %v119
    %v226 = vunpack.c.h.b16 %v119
    %v227 = vunpack.c.l.b16 %v120
    %v228 = vunpack.c.h.b16 %v120
    %v229 = vunpack.c.l.b16 %v121
    %v230 = vunpack.c.h.b16 %v121
    %v231 = vunpack.c.l.b16 %v122
    %v232 = vunpack.c.h.b16 %v122
    %v233 = vunpack.c.l.b16 %v123
    %v234 = vunpack.c.h.b16 %v123
    %v235 = vpack.c.b16 %v173, %v171
    %v236 = vpack.c.b16 %v174, %v172
    %v237 = vpack.c.b16 %v177, %v175
    %v238 = vpack.c.b16 %v178, %v176
    %v239 = vpack.c.b16 %v181, %v179
    %v240 = vpack.c.b16 %v182, %v180
    %v241 = vpack.c.b16 %v185, %v183
    %v242 = vpack.c.b16 %v186, %v184
    %v243 = vpack.c.b16 %v189, %v187
    %v244 = vpack.c.b16 %v190, %v188
    %v245 = vpack.c.b16 %v193, %v191
    %v246 = vpack.c.b16 %v194, %v192
    %v247 = vpack.c.b16 %v197, %v195
    %v248 = vpack.c.b16 %v198, %v196
    %v249 = vpack.c.b16 %v201, %v199
    %v250 = vpack.c.b16 %v202, %v200
    %v251 = vpack.c.b16 %v205, %v203
    %v252 = vpack.c.b16 %v206, %v204
    %v253 = vpack.c.b16 %v209, %v207
    %v254 = vpack.c.b16 %v210, %v208
    %v255 = vpack.c.b16 %v213, %v211
    %v256 = vpack.c.b16 %v214, %v212
    %v257 = vpack.c.b16 %v217, %v215
    %v258 = vpack.c.b16 %v218, %v216
    %v259 = vpack.c.b16 %v221, %v219
    %v260 = vpack.c.b16 %v222, %v220
    %v261 = vpack.c.b16 %v225, %v223
    %v262 = vpack.c.b16 %v226, %v224
    %v263 = vpack.c.b16 %v229, %v227
    %v264 = vpack.c.b16 %v230, %v228
    %v265 = vpack.c.b16 %v233, %v231
    %v266 = vpack.c.b16 %v234, %v232
    %299 = vmatpush.bf16.msra.mxu0 %v249
    %300 = vmatpush.bf16.msra.mxu0 %v247
    %301 = vmatpush.bf16.msra.mxu0 %v245
    %302 = vmatpush.bf16.msra.mxu0 %v243
    %303 = vmatpush.bf16.msra.mxu0 %v241
    %304 = vmatpush.bf16.msra.mxu0 %v239
    %305 = vmatpush.bf16.msra.mxu0 %v237
    %306 = vmatpush.bf16.msra.mxu0 %v235
    %307 = vmatmul.bf16.gmra.mxu0 %v135
    %v308 = vpop.f32.mrf.mxu0
    %v309 = vadd.f32 %v125, %v308
    %v310 = vpop.f32.mrf.mxu0
    %v311 = vadd.f32 %v125, %v310
    %312 = vdwg.mxu0
    %313 = vmatpush.bf16.msra.mxu0 %v265
    %314 = vmatpush.bf16.msra.mxu0 %v263
    %315 = vmatpush.bf16.msra.mxu0 %v261
    %316 = vmatpush.bf16.msra.mxu0 %v259
    %317 = vmatpush.bf16.msra.mxu0 %v257
    %318 = vmatpush.bf16.msra.mxu0 %v255
    %319 = vmatpush.bf16.msra.mxu0 %v253
    %320 = vmatpush.bf16.msra.mxu0 %v251
    %321 = vmatmul.bf16.gmra.mxu0 %v136
    %v322 = vpop.f32.mrf.mxu0
    %v323 = vadd.f32 %v309, %v322
    %v324 = vpop.f32.mrf.mxu0
    %v325 = vadd.f32 %v311, %v324
    %326 = vdwg.mxu0
    %327 = vmatpush.bf16.msra.mxu0 %v250
    %328 = vmatpush.bf16.msra.mxu0 %v248
    %329 = vmatpush.bf16.msra.mxu0 %v246
    %330 = vmatpush.bf16.msra.mxu0 %v244
    %331 = vmatpush.bf16.msra.mxu0 %v242
    %332 = vmatpush.bf16.msra.mxu0 %v240
    %333 = vmatpush.bf16.msra.mxu0 %v238
    %334 = vmatpush.bf16.msra.mxu0 %v236
    %335 = vmatmul.bf16.gmra.mxu0 %v135
    %v336 = vpop.f32.mrf.mxu0
    %v337 = vadd.f32 %v126, %v336
    %v338 = vpop.f32.mrf.mxu0
    %v339 = vadd.f32 %v126, %v338
    %340 = vdwg.mxu0
    %341 = vmatpush.bf16.msra.mxu0 %v266
    %342 = vmatpush.bf16.msra.mxu0 %v264
    %343 = vmatpush.bf16.msra.mxu0 %v262
    %344 = vmatpush.bf16.msra.mxu0 %v260
    %345 = vmatpush.bf16.msra.mxu0 %v258
    %346 = vmatpush.bf16.msra.mxu0 %v256
    %347 = vmatpush.bf16.msra.mxu0 %v254
    %348 = vmatpush.bf16.msra.mxu0 %v252
    %349 = vmatmul.bf16.gmra.mxu0 %v136
    %v350 = vpop.f32.mrf.mxu0
    %v351 = vadd.f32 %v337, %v350
    %v352 = vpop.f32.mrf.mxu0
    %v353 = vadd.f32 %v339, %v352
    %354 = vdwg.mxu0
    %v355 = vmax.f32 %v323, 0.0
    %v356 = vmax.f32 %v351, 0.0
    %v357 = vmax.f32 %v325, 0.0
    %v358 = vmax.f32 %v353, 0.0
    %v359 = vadd.f32 %v355, %v356
    %360 = vadd.xlane.f32.xlu0 %v359
    %v361 = vpop.xlane.xlu0 %360
    %v362 = vadd.f32 %v357, %v358
    %363 = vadd.xlane.f32.xlu0 %v362
    %v364 = vpop.xlane.xlu0 %363
    %v365 = vmul.f32 %v355, %v355
    %v366 = vmul.f32 %v356, %v356
    %v367 = vmul.f32 %v357, %v357
    %v368 = vmul.f32 %v358, %v358
    %v369 = vadd.f32 %v365, %v366
    %370 = vadd.xlane.f32.xlu0 %v369
    %v371 = vpop.xlane.xlu0 %370
    %v372 = vadd.f32 %v367, %v368
    %373 = vadd.xlane.f32.xlu0 %v372
    %v374 = vpop.xlane.xlu0 %373
    %v375 = vmul.f32 %v361, 0.00390625
    %v376 = vmul.f32 %v364, 0.00390625
    %v377 = vmul.f32 %v371, 0.00390625
    %v378 = vmul.f32 %v374, 0.00390625
    %v379 = vmul.f32 %v375, %v375
    %v380 = vmul.f32 %v376, %v376
    %v381 = vsub.f32 %v377, %v379
    %v382 = vsub.f32 %v378, %v380
    %v383 = vsub.f32 %v355, %v375
    %v384 = vsub.f32 %v356, %v375
    %v385 = vsub.f32 %v357, %v376
    %v386 = vsub.f32 %v358, %v376
    %v387 = vadd.f32 %v381, 1e-05
    %v388 = vadd.f32 %v382, 1e-05
    %v389 = vrsqrt.pop %v387
    %v390 = vmul.f32 %v389, %v387
    %v391 = vmul.f32 %v390, %v389
    %v392 = vmul.f32 0.5, %v391
    %v393 = vsub.f32 1.5, %v392
    %v394 = vmul.f32 %v389, %v393
    %vm395 = vweird.f32 %v387
    %vm396 = vweird.f32 %v389
    %vm397 = vmor %vm395, %vm396
    %v398 = vsel %vm397, %v389, %v394
    %v399 = vrsqrt.pop %v388
    %v400 = vmul.f32 %v399, %v388
    %v401 = vmul.f32 %v400, %v399
    %v402 = vmul.f32 0.5, %v401
    %v403 = vsub.f32 1.5, %v402
    %v404 = vmul.f32 %v399, %v403
    %vm405 = vweird.f32 %v388
    %vm406 = vweird.f32 %v399
    %vm407 = vmor %vm405, %vm406
    %v408 = vsel %vm407, %v399, %v404
    %v409 = vmul.f32 %v383, %v398
    %v410 = vmul.f32 %v384, %v398
    %v411 = vmul.f32 %v385, %v408
    %v412 = vmul.f32 %v386, %v408
    %s413 = scalar_lea.vmem %s5, 1
    %v414 = vld [vmem:[%s413] ss:$4 sm:$0x3]
    %v415 = vpack.c.bf16 %v411, %v409
    %v416 = vpack.c.bf16 %v412, %v410
    %v417 = vld [vmem:[#allocation4] sm:$0xff]
    %v418 = vld [vmem:[#allocation4 + $0x8] sm:$0xff]
    %v419 = vld [vmem:[#allocation4 + $0x10] sm:$0xff]
    %v420 = vld [vmem:[#allocation4 + $0x18] sm:$0xff]
    %v421 = vld [vmem:[#allocation4 + $0x20] sm:$0xff]
    %v422 = vld [vmem:[#allocation4 + $0x28] sm:$0xff]
    %v423 = vld [vmem:[#allocation4 + $0x30] sm:$0xff]
    %v424 = vld [vmem:[#allocation4 + $0x38] sm:$0xff]
    %v425 = vld [vmem:[#allocation4 + $0x40] sm:$0xff]
    %v426 = vld [vmem:[#allocation4 + $0x48] sm:$0xff]
    %v427 = vld [vmem:[#allocation4 + $0x50] sm:$0xff]
    %v428 = vld [vmem:[#allocation4 + $0x58] sm:$0xff]
    %v429 = vld [vmem:[#allocation4 + $0x60] sm:$0xff]
    %v430 = vld [vmem:[#allocation4 + $0x68] sm:$0xff]
    %v431 = vld [vmem:[#allocation4 + $0x70] sm:$0xff]
    %v432 = vld [vmem:[#allocation4 + $0x78] sm:$0xff]
    %v433 = vld [vmem:[#allocation4 + $0x80] sm:$0xff]
    %v434 = vld [vmem:[#allocation4 + $0x88] sm:$0xff]
    %v435 = vld [vmem:[#allocation4 + $0x90] sm:$0xff]
    %v436 = vld [vmem:[#allocation4 + $0x98] sm:$0xff]
    %v437 = vld [vmem:[#allocation4 + $0xa0] sm:$0xff]
    %v438 = vld [vmem:[#allocation4 + $0xa8] sm:$0xff]
    %v439 = vld [vmem:[#allocation4 + $0xb0] sm:$0xff]
    %v440 = vld [vmem:[#allocation4 + $0xb8] sm:$0xff]
    %v441 = vld [vmem:[#allocation4 + $0xc0] sm:$0xff]
    %v442 = vld [vmem:[#allocation4 + $0xc8] sm:$0xff]
    %v443 = vld [vmem:[#allocation4 + $0xd0] sm:$0xff]
    %v444 = vld [vmem:[#allocation4 + $0xd8] sm:$0xff]
    %v445 = vld [vmem:[#allocation4 + $0xe0] sm:$0xff]
    %v446 = vld [vmem:[#allocation4 + $0xe8] sm:$0xff]
    %v447 = vld [vmem:[#allocation4 + $0xf0] sm:$0xff]
    %v448 = vld [vmem:[#allocation4 + $0xf8] sm:$0xff]
    %v450 = vperm.slane %v414, 0
    %v451 = vperm.slane %v414, 1
    %v486 = vunpack.c.l.b16 %v417
    %v487 = vunpack.c.h.b16 %v417
    %v488 = vunpack.c.l.b16 %v418
    %v489 = vunpack.c.h.b16 %v418
    %v490 = vunpack.c.l.b16 %v419
    %v491 = vunpack.c.h.b16 %v419
    %v492 = vunpack.c.l.b16 %v420
    %v493 = vunpack.c.h.b16 %v420
    %v494 = vunpack.c.l.b16 %v421
    %v495 = vunpack.c.h.b16 %v421
    %v496 = vunpack.c.l.b16 %v422
    %v497 = vunpack.c.h.b16 %v422
    %v498 = vunpack.c.l.b16 %v423
    %v499 = vunpack.c.h.b16 %v423
    %v500 = vunpack.c.l.b16 %v424
    %v501 = vunpack.c.h.b16 %v424
    %v502 = vunpack.c.l.b16 %v425
    %v503 = vunpack.c.h.b16 %v425
    %v504 = vunpack.c.l.b16 %v426
    %v505 = vunpack.c.h.b16 %v426
    %v506 = vunpack.c.l.b16 %v427
    %v507 = vunpack.c.h.b16 %v427
    %v508 = vunpack.c.l.b16 %v428
    %v509 = vunpack.c.h.b16 %v428
    %v510 = vunpack.c.l.b16 %v429
    %v511 = vunpack.c.h.b16 %v429
    %v512 = vunpack.c.l.b16 %v430
    %v513 = vunpack.c.h.b16 %v430
    %v514 = vunpack.c.l.b16 %v431
    %v515 = vunpack.c.h.b16 %v431
    %v516 = vunpack.c.l.b16 %v432
    %v517 = vunpack.c.h.b16 %v432
    %v518 = vunpack.c.l.b16 %v433
    %v519 = vunpack.c.h.b16 %v433
    %v520 = vunpack.c.l.b16 %v434
    %v521 = vunpack.c.h.b16 %v434
    %v522 = vunpack.c.l.b16 %v435
    %v523 = vunpack.c.h.b16 %v435
    %v524 = vunpack.c.l.b16 %v436
    %v525 = vunpack.c.h.b16 %v436
    %v526 = vunpack.c.l.b16 %v437
    %v527 = vunpack.c.h.b16 %v437
    %v528 = vunpack.c.l.b16 %v438
    %v529 = vunpack.c.h.b16 %v438
    %v530 = vunpack.c.l.b16 %v439
    %v531 = vunpack.c.h.b16 %v439
    %v532 = vunpack.c.l.b16 %v440
    %v533 = vunpack.c.h.b16 %v440
    %v534 = vunpack.c.l.b16 %v441
    %v535 = vunpack.c.h.b16 %v441
    %v536 = vunpack.c.l.b16 %v442
    %v537 = vunpack.c.h.b16 %v442
    %v538 = vunpack.c.l.b16 %v443
    %v539 = vunpack.c.h.b16 %v443
    %v540 = vunpack.c.l.b16 %v444
    %v541 = vunpack.c.h.b16 %v444
    %v542 = vunpack.c.l.b16 %v445
    %v543 = vunpack.c.h.b16 %v445
    %v544 = vunpack.c.l.b16 %v446
    %v545 = vunpack.c.h.b16 %v446
    %v546 = vunpack.c.l.b16 %v447
    %v547 = vunpack.c.h.b16 %v447
    %v548 = vunpack.c.l.b16 %v448
    %v549 = vunpack.c.h.b16 %v448
    %v550 = vpack.c.b16 %v488, %v486
    %v551 = vpack.c.b16 %v489, %v487
    %v552 = vpack.c.b16 %v492, %v490
    %v553 = vpack.c.b16 %v493, %v491
    %v554 = vpack.c.b16 %v496, %v494
    %v555 = vpack.c.b16 %v497, %v495
    %v556 = vpack.c.b16 %v500, %v498
    %v557 = vpack.c.b16 %v501, %v499
    %v558 = vpack.c.b16 %v504, %v502
    %v559 = vpack.c.b16 %v505, %v503
    %v560 = vpack.c.b16 %v508, %v506
    %v561 = vpack.c.b16 %v509, %v507
    %v562 = vpack.c.b16 %v512, %v510
    %v563 = vpack.c.b16 %v513, %v511
    %v564 = vpack.c.b16 %v516, %v514
    %v565 = vpack.c.b16 %v517, %v515
    %v566 = vpack.c.b16 %v520, %v518
    %v567 = vpack.c.b16 %v521, %v519
    %v568 = vpack.c.b16 %v524, %v522
    %v569 = vpack.c.b16 %v525, %v523
    %v570 = vpack.c.b16 %v528, %v526
    %v571 = vpack.c.b16 %v529, %v527
    %v572 = vpack.c.b16 %v532, %v530
    %v573 = vpack.c.b16 %v533, %v531
    %v574 = vpack.c.b16 %v536, %v534
    %v575 = vpack.c.b16 %v537, %v535
    %v576 = vpack.c.b16 %v540, %v538
    %v577 = vpack.c.b16 %v541, %v539
    %v578 = vpack.c.b16 %v544, %v542
    %v579 = vpack.c.b16 %v545, %v543
    %v580 = vpack.c.b16 %v548, %v546
    %v581 = vpack.c.b16 %v549, %v547
    %614 = vmatpush.bf16.msra.mxu0 %v564
    %615 = vmatpush.bf16.msra.mxu0 %v562
    %616 = vmatpush.bf16.msra.mxu0 %v560
    %617 = vmatpush.bf16.msra.mxu0 %v558
    %618 = vmatpush.bf16.msra.mxu0 %v556
    %619 = vmatpush.bf16.msra.mxu0 %v554
    %620 = vmatpush.bf16.msra.mxu0 %v552
    %621 = vmatpush.bf16.msra.mxu0 %v550
    %622 = vmatmul.bf16.gmra.mxu0 %v415
    %v623 = vpop.f32.mrf.mxu0
    %v624 = vadd.f32 %v450, %v623
    %v625 = vpop.f32.mrf.mxu0
    %v626 = vadd.f32 %v450, %v625
    %627 = vdwg.mxu0
    %628 = vmatpush.bf16.msra.mxu0 %v580
    %629 = vmatpush.bf16.msra.mxu0 %v578
    %630 = vmatpush.bf16.msra.mxu0 %v576
    %631 = vmatpush.bf16.msra.mxu0 %v574
    %632 = vmatpush.bf16.msra.mxu0 %v572
    %633 = vmatpush.bf16.msra.mxu0 %v570
    %634 = vmatpush.bf16.msra.mxu0 %v568
    %635 = vmatpush.bf16.msra.mxu0 %v566
    %636 = vmatmul.bf16.gmra.mxu0 %v416
    %v637 = vpop.f32.mrf.mxu0
    %v638 = vadd.f32 %v624, %v637
    %v639 = vpop.f32.mrf.mxu0
    %v640 = vadd.f32 %v626, %v639
    %641 = vdwg.mxu0
    %642 = vmatpush.bf16.msra.mxu0 %v565
    %643 = vmatpush.bf16.msra.mxu0 %v563
    %644 = vmatpush.bf16.msra.mxu0 %v561
    %645 = vmatpush.bf16.msra.mxu0 %v559
    %646 = vmatpush.bf16.msra.mxu0 %v557
    %647 = vmatpush.bf16.msra.mxu0 %v555
    %648 = vmatpush.bf16.msra.mxu0 %v553
    %649 = vmatpush.bf16.msra.mxu0 %v551
    %650 = vmatmul.bf16.gmra.mxu0 %v415
    %v651 = vpop.f32.mrf.mxu0
    %v652 = vadd.f32 %v451, %v651
    %v653 = vpop.f32.mrf.mxu0
    %v654 = vadd.f32 %v451, %v653
    %655 = vdwg.mxu0
    %656 = vmatpush.bf16.msra.mxu0 %v581
    %657 = vmatpush.bf16.msra.mxu0 %v579
    %658 = vmatpush.bf16.msra.mxu0 %v577
    %659 = vmatpush.bf16.msra.mxu0 %v575
    %660 = vmatpush.bf16.msra.mxu0 %v573
    %661 = vmatpush.bf16.msra.mxu0 %v571
    %662 = vmatpush.bf16.msra.mxu0 %v569
    %663 = vmatpush.bf16.msra.mxu0 %v567
    %664 = vmatmul.bf16.gmra.mxu0 %v416
    %v665 = vpop.f32.mrf.mxu0
    %v666 = vadd.f32 %v652, %v665
    %v667 = vpop.f32.mrf.mxu0
    %v668 = vadd.f32 %v654, %v667
    %669 = vdwg.mxu0
    %v670 = vmax.f32 %v638, 0.0
    %v671 = vmax.f32 %v666, 0.0
    %v672 = vmax.f32 %v640, 0.0
    %v673 = vmax.f32 %v668, 0.0
    %v674 = vadd.f32 %v670, %v671
    %675 = vadd.xlane.f32.xlu0 %v674
    %v676 = vpop.xlane.xlu0 %675
    %v677 = vadd.f32 %v672, %v673
    %678 = vadd.xlane.f32.xlu0 %v677
    %v679 = vpop.xlane.xlu0 %678
    %v680 = vmul.f32 %v670, %v670
    %v681 = vmul.f32 %v671, %v671
    %v682 = vmul.f32 %v672, %v672
    %v683 = vmul.f32 %v673, %v673
    %v684 = vadd.f32 %v680, %v681
    %685 = vadd.xlane.f32.xlu0 %v684
    %v686 = vpop.xlane.xlu0 %685
    %v687 = vadd.f32 %v682, %v683
    %688 = vadd.xlane.f32.xlu0 %v687
    %v689 = vpop.xlane.xlu0 %688
    %v690 = vmul.f32 %v676, 0.00390625
    %v691 = vmul.f32 %v679, 0.00390625
    %v692 = vmul.f32 %v686, 0.00390625
    %v693 = vmul.f32 %v689, 0.00390625
    %v694 = vmul.f32 %v690, %v690
    %v695 = vmul.f32 %v691, %v691
    %v696 = vsub.f32 %v692, %v694
    %v697 = vsub.f32 %v693, %v695
    %v698 = vsub.f32 %v670, %v690
    %v699 = vsub.f32 %v671, %v690
    %v700 = vsub.f32 %v672, %v691
    %v701 = vsub.f32 %v673, %v691
    %v702 = vadd.f32 %v696, 1e-05
    %v703 = vadd.f32 %v697, 1e-05
    %v704 = vrsqrt.pop %v702
    %v705 = vmul.f32 %v704, %v702
    %v706 = vmul.f32 %v705, %v704
    %v707 = vmul.f32 0.5, %v706
    %v708 = vsub.f32 1.5, %v707
    %v709 = vmul.f32 %v704, %v708
    %vm710 = vweird.f32 %v702
    %vm711 = vweird.f32 %v704
    %vm712 = vmor %vm710, %vm711
    %v713 = vsel %vm712, %v704, %v709
    %v714 = vrsqrt.pop %v703
    %v715 = vmul.f32 %v714, %v703
    %v716 = vmul.f32 %v715, %v714
    %v717 = vmul.f32 0.5, %v716
    %v718 = vsub.f32 1.5, %v717
    %v719 = vmul.f32 %v714, %v718
    %vm720 = vweird.f32 %v703
    %vm721 = vweird.f32 %v714
    %vm722 = vmor %vm720, %vm721
    %v723 = vsel %vm722, %v714, %v719
    %v724 = vmul.f32 %v698, %v713
    %v725 = vmul.f32 %v699, %v713
    %v726 = vmul.f32 %v700, %v723
    %v727 = vmul.f32 %v701, %v723
    %s728 = scalar_lea.vmem %s5, 2
    %v729 = vld [vmem:[%s728] ss:$4 sm:$0x3]
    %v730 = vpack.c.bf16 %v726, %v724
    %v731 = vpack.c.bf16 %v727, %v725
    %v732 = vld [vmem:[#allocation6] sm:$0xff]
    %v733 = vld [vmem:[#allocation6 + $0x8] sm:$0xff]
    %v734 = vld [vmem:[#allocation6 + $0x10] sm:$0xff]
    %v735 = vld [vmem:[#allocation6 + $0x18] sm:$0xff]
    %v736 = vld [vmem:[#allocation6 + $0x20] sm:$0xff]
    %v737 = vld [vmem:[#allocation6 + $0x28] sm:$0xff]
    %v738 = vld [vmem:[#allocation6 + $0x30] sm:$0xff]
    %v739 = vld [vmem:[#allocation6 + $0x38] sm:$0xff]
    %v740 = vld [vmem:[#allocation6 + $0x40] sm:$0xff]
    %v741 = vld [vmem:[#allocation6 + $0x48] sm:$0xff]
    %v742 = vld [vmem:[#allocation6 + $0x50] sm:$0xff]
    %v743 = vld [vmem:[#allocation6 + $0x58] sm:$0xff]
    %v744 = vld [vmem:[#allocation6 + $0x60] sm:$0xff]
    %v745 = vld [vmem:[#allocation6 + $0x68] sm:$0xff]
    %v746 = vld [vmem:[#allocation6 + $0x70] sm:$0xff]
    %v747 = vld [vmem:[#allocation6 + $0x78] sm:$0xff]
    %v748 = vld [vmem:[#allocation6 + $0x80] sm:$0xff]
    %v749 = vld [vmem:[#allocation6 + $0x88] sm:$0xff]
    %v750 = vld [vmem:[#allocation6 + $0x90] sm:$0xff]
    %v751 = vld [vmem:[#allocation6 + $0x98] sm:$0xff]
    %v752 = vld [vmem:[#allocation6 + $0xa0] sm:$0xff]
    %v753 = vld [vmem:[#allocation6 + $0xa8] sm:$0xff]
    %v754 = vld [vmem:[#allocation6 + $0xb0] sm:$0xff]
    %v755 = vld [vmem:[#allocation6 + $0xb8] sm:$0xff]
    %v756 = vld [vmem:[#allocation6 + $0xc0] sm:$0xff]
    %v757 = vld [vmem:[#allocation6 + $0xc8] sm:$0xff]
    %v758 = vld [vmem:[#allocation6 + $0xd0] sm:$0xff]
    %v759 = vld [vmem:[#allocation6 + $0xd8] sm:$0xff]
    %v760 = vld [vmem:[#allocation6 + $0xe0] sm:$0xff]
    %v761 = vld [vmem:[#allocation6 + $0xe8] sm:$0xff]
    %v762 = vld [vmem:[#allocation6 + $0xf0] sm:$0xff]
    %v763 = vld [vmem:[#allocation6 + $0xf8] sm:$0xff]
    %v765 = vperm.slane %v729, 0
    %v766 = vperm.slane %v729, 1
    %v801 = vunpack.c.l.b16 %v732
    %v802 = vunpack.c.h.b16 %v732
    %v803 = vunpack.c.l.b16 %v733
    %v804 = vunpack.c.h.b16 %v733
    %v805 = vunpack.c.l.b16 %v734
    %v806 = vunpack.c.h.b16 %v734
    %v807 = vunpack.c.l.b16 %v735
    %v808 = vunpack.c.h.b16 %v735
    %v809 = vunpack.c.l.b16 %v736
    %v810 = vunpack.c.h.b16 %v736
    %v811 = vunpack.c.l.b16 %v737
    %v812 = vunpack.c.h.b16 %v737
    %v813 = vunpack.c.l.b16 %v738
    %v814 = vunpack.c.h.b16 %v738
    %v815 = vunpack.c.l.b16 %v739
    %v816 = vunpack.c.h.b16 %v739
    %v817 = vunpack.c.l.b16 %v740
    %v818 = vunpack.c.h.b16 %v740
    %v819 = vunpack.c.l.b16 %v741
    %v820 = vunpack.c.h.b16 %v741
    %v821 = vunpack.c.l.b16 %v742
    %v822 = vunpack.c.h.b16 %v742
    %v823 = vunpack.c.l.b16 %v743
    %v824 = vunpack.c.h.b16 %v743
    %v825 = vunpack.c.l.b16 %v744
    %v826 = vunpack.c.h.b16 %v744
    %v827 = vunpack.c.l.b16 %v745
    %v828 = vunpack.c.h.b16 %v745
    %v829 = vunpack.c.l.b16 %v746
    %v830 = vunpack.c.h.b16 %v746
    %v831 = vunpack.c.l.b16 %v747
    %v832 = vunpack.c.h.b16 %v747
    %v833 = vunpack.c.l.b16 %v748
    %v834 = vunpack.c.h.b16 %v748
    %v835 = vunpack.c.l.b16 %v749
    %v836 = vunpack.c.h.b16 %v749
    %v837 = vunpack.c.l.b16 %v750
    %v838 = vunpack.c.h.b16 %v750
    %v839 = vunpack.c.l.b16 %v751
    %v840 = vunpack.c.h.b16 %v751
    %v841 = vunpack.c.l.b16 %v752
    %v842 = vunpack.c.h.b16 %v752
    %v843 = vunpack.c.l.b16 %v753
    %v844 = vunpack.c.h.b16 %v753
    %v845 = vunpack.c.l.b16 %v754
    %v846 = vunpack.c.h.b16 %v754
    %v847 = vunpack.c.l.b16 %v755
    %v848 = vunpack.c.h.b16 %v755
    %v849 = vunpack.c.l.b16 %v756
    %v850 = vunpack.c.h.b16 %v756
    %v851 = vunpack.c.l.b16 %v757
    %v852 = vunpack.c.h.b16 %v757
    %v853 = vunpack.c.l.b16 %v758
    %v854 = vunpack.c.h.b16 %v758
    %v855 = vunpack.c.l.b16 %v759
    %v856 = vunpack.c.h.b16 %v759
    %v857 = vunpack.c.l.b16 %v760
    %v858 = vunpack.c.h.b16 %v760
    %v859 = vunpack.c.l.b16 %v761
    %v860 = vunpack.c.h.b16 %v761
    %v861 = vunpack.c.l.b16 %v762
    %v862 = vunpack.c.h.b16 %v762
    %v863 = vunpack.c.l.b16 %v763
    %v864 = vunpack.c.h.b16 %v763
    %v865 = vpack.c.b16 %v803, %v801
    %v866 = vpack.c.b16 %v804, %v802
    %v867 = vpack.c.b16 %v807, %v805
    %v868 = vpack.c.b16 %v808, %v806
    %v869 = vpack.c.b16 %v811, %v809
    %v870 = vpack.c.b16 %v812, %v810
    %v871 = vpack.c.b16 %v815, %v813
    %v872 = vpack.c.b16 %v816, %v814
    %v873 = vpack.c.b16 %v819, %v817
    %v874 = vpack.c.b16 %v820, %v818
    %v875 = vpack.c.b16 %v823, %v821
    %v876 = vpack.c.b16 %v824, %v822
    %v877 = vpack.c.b16 %v827, %v825
    %v878 = vpack.c.b16 %v828, %v826
    %v879 = vpack.c.b16 %v831, %v829
    %v880 = vpack.c.b16 %v832, %v830
    %v881 = vpack.c.b16 %v835, %v833
    %v882 = vpack.c.b16 %v836, %v834
    %v883 = vpack.c.b16 %v839, %v837
    %v884 = vpack.c.b16 %v840, %v838
    %v885 = vpack.c.b16 %v843, %v841
    %v886 = vpack.c.b16 %v844, %v842
    %v887 = vpack.c.b16 %v847, %v845
    %v888 = vpack.c.b16 %v848, %v846
    %v889 = vpack.c.b16 %v851, %v849
    %v890 = vpack.c.b16 %v852, %v850
    %v891 = vpack.c.b16 %v855, %v853
    %v892 = vpack.c.b16 %v856, %v854
    %v893 = vpack.c.b16 %v859, %v857
    %v894 = vpack.c.b16 %v860, %v858
    %v895 = vpack.c.b16 %v863, %v861
    %v896 = vpack.c.b16 %v864, %v862
    %929 = vmatpush.bf16.msra.mxu0 %v879
    %930 = vmatpush.bf16.msra.mxu0 %v877
    %931 = vmatpush.bf16.msra.mxu0 %v875
    %932 = vmatpush.bf16.msra.mxu0 %v873
    %933 = vmatpush.bf16.msra.mxu0 %v871
    %934 = vmatpush.bf16.msra.mxu0 %v869
    %935 = vmatpush.bf16.msra.mxu0 %v867
    %936 = vmatpush.bf16.msra.mxu0 %v865
    %937 = vmatmul.bf16.gmra.mxu0 %v730
    %v938 = vpop.f32.mrf.mxu0
    %v939 = vadd.f32 %v765, %v938
    %v940 = vpop.f32.mrf.mxu0
    %v941 = vadd.f32 %v765, %v940
    %942 = vdwg.mxu0
    %943 = vmatpush.bf16.msra.mxu0 %v895
    %944 = vmatpush.bf16.msra.mxu0 %v893
    %945 = vmatpush.bf16.msra.mxu0 %v891
    %946 = vmatpush.bf16.msra.mxu0 %v889
    %947 = vmatpush.bf16.msra.mxu0 %v887
    %948 = vmatpush.bf16.msra.mxu0 %v885
    %949 = vmatpush.bf16.msra.mxu0 %v883
    %950 = vmatpush.bf16.msra.mxu0 %v881
    %951 = vmatmul.bf16.gmra.mxu0 %v731
    %v952 = vpop.f32.mrf.mxu0
    %v953 = vadd.f32 %v939, %v952
    %v954 = vpop.f32.mrf.mxu0
    %v955 = vadd.f32 %v941, %v954
    %956 = vdwg.mxu0
    %957 = vmatpush.bf16.msra.mxu0 %v880
    %958 = vmatpush.bf16.msra.mxu0 %v878
    %959 = vmatpush.bf16.msra.mxu0 %v876
    %960 = vmatpush.bf16.msra.mxu0 %v874
    %961 = vmatpush.bf16.msra.mxu0 %v872
    %962 = vmatpush.bf16.msra.mxu0 %v870
    %963 = vmatpush.bf16.msra.mxu0 %v868
    %964 = vmatpush.bf16.msra.mxu0 %v866
    %965 = vmatmul.bf16.gmra.mxu0 %v730
    %v966 = vpop.f32.mrf.mxu0
    %v967 = vadd.f32 %v766, %v966
    %v968 = vpop.f32.mrf.mxu0
    %v969 = vadd.f32 %v766, %v968
    %970 = vdwg.mxu0
    %971 = vmatpush.bf16.msra.mxu0 %v896
    %972 = vmatpush.bf16.msra.mxu0 %v894
    %973 = vmatpush.bf16.msra.mxu0 %v892
    %974 = vmatpush.bf16.msra.mxu0 %v890
    %975 = vmatpush.bf16.msra.mxu0 %v888
    %976 = vmatpush.bf16.msra.mxu0 %v886
    %977 = vmatpush.bf16.msra.mxu0 %v884
    %978 = vmatpush.bf16.msra.mxu0 %v882
    %979 = vmatmul.bf16.gmra.mxu0 %v731
    %v980 = vpop.f32.mrf.mxu0
    %v981 = vadd.f32 %v967, %v980
    %v982 = vpop.f32.mrf.mxu0
    %v983 = vadd.f32 %v969, %v982
    %984 = vdwg.mxu0
    %v985 = vmax.f32 %v953, 0.0
    %v986 = vmax.f32 %v981, 0.0
    %v987 = vmax.f32 %v955, 0.0
    %v988 = vmax.f32 %v983, 0.0
    %v989 = vadd.f32 %v985, %v986
    %990 = vadd.xlane.f32.xlu0 %v989
    %v991 = vpop.xlane.xlu0 %990
    %v992 = vadd.f32 %v987, %v988
    %993 = vadd.xlane.f32.xlu0 %v992
    %v994 = vpop.xlane.xlu0 %993
    %v995 = vmul.f32 %v985, %v985
    %v996 = vmul.f32 %v986, %v986
    %v997 = vmul.f32 %v987, %v987
    %v998 = vmul.f32 %v988, %v988
    %v999 = vadd.f32 %v995, %v996
    %1000 = vadd.xlane.f32.xlu0 %v999
    %v1001 = vpop.xlane.xlu0 %1000
    %v1002 = vadd.f32 %v997, %v998
    %1003 = vadd.xlane.f32.xlu0 %v1002
    %v1004 = vpop.xlane.xlu0 %1003
    %v1005 = vmul.f32 %v991, 0.00390625
    %v1006 = vmul.f32 %v994, 0.00390625
    %v1007 = vmul.f32 %v1001, 0.00390625
    %v1008 = vmul.f32 %v1004, 0.00390625
    %v1009 = vmul.f32 %v1005, %v1005
    %v1010 = vmul.f32 %v1006, %v1006
    %v1011 = vsub.f32 %v1007, %v1009
    %v1012 = vsub.f32 %v1008, %v1010
    %v1013 = vsub.f32 %v985, %v1005
    %v1014 = vsub.f32 %v986, %v1005
    %v1015 = vsub.f32 %v987, %v1006
    %v1016 = vsub.f32 %v988, %v1006
    %v1017 = vadd.f32 %v1011, 1e-05
    %v1018 = vadd.f32 %v1012, 1e-05
    %v1019 = vrsqrt.pop %v1017
    %v1020 = vmul.f32 %v1019, %v1017
    %v1021 = vmul.f32 %v1020, %v1019
    %v1022 = vmul.f32 0.5, %v1021
    %v1023 = vsub.f32 1.5, %v1022
    %v1024 = vmul.f32 %v1019, %v1023
    %vm1025 = vweird.f32 %v1017
    %vm1026 = vweird.f32 %v1019
    %vm1027 = vmor %vm1025, %vm1026
    %v1028 = vsel %vm1027, %v1019, %v1024
    %v1029 = vrsqrt.pop %v1018
    %v1030 = vmul.f32 %v1029, %v1018
    %v1031 = vmul.f32 %v1030, %v1029
    %v1032 = vmul.f32 0.5, %v1031
    %v1033 = vsub.f32 1.5, %v1032
    %v1034 = vmul.f32 %v1029, %v1033
    %vm1035 = vweird.f32 %v1018
    %vm1036 = vweird.f32 %v1029
    %vm1037 = vmor %vm1035, %vm1036
    %v1038 = vsel %vm1037, %v1029, %v1034
    %v1039 = vmul.f32 %v1013, %v1028
    %v1040 = vmul.f32 %v1014, %v1028
    %v1041 = vmul.f32 %v1015, %v1038
    %v1042 = vmul.f32 %v1016, %v1038
    %v1043 = vld [vmem:[%s6] sm:$0x1]
    %v1044 = vpack.c.bf16 %v1041, %v1039
    %v1045 = vpack.c.bf16 %v1042, %v1040
    %v1046 = vld [vmem:[#allocation7] sm:$0xf]
    %v1047 = vld [vmem:[#allocation7 + $0x4] sm:$0xf]
    %v1048 = vld [vmem:[#allocation7 + $0x8] sm:$0xf]
    %v1049 = vld [vmem:[#allocation7 + $0xc] sm:$0xf]
    %v1050 = vld [vmem:[#allocation7 + $0x10] sm:$0xf]
    %v1051 = vld [vmem:[#allocation7 + $0x14] sm:$0xf]
    %v1052 = vld [vmem:[#allocation7 + $0x18] sm:$0xf]
    %v1053 = vld [vmem:[#allocation7 + $0x1c] sm:$0xf]
    %v1054 = vld [vmem:[#allocation7 + $0x20] sm:$0xf]
    %v1055 = vld [vmem:[#allocation7 + $0x24] sm:$0xf]
    %v1056 = vld [vmem:[#allocation7 + $0x28] sm:$0xf]
    %v1057 = vld [vmem:[#allocation7 + $0x2c] sm:$0xf]
    %v1058 = vld [vmem:[#allocation7 + $0x30] sm:$0xf]
    %v1059 = vld [vmem:[#allocation7 + $0x34] sm:$0xf]
    %v1060 = vld [vmem:[#allocation7 + $0x38] sm:$0xf]
    %v1061 = vld [vmem:[#allocation7 + $0x3c] sm:$0xf]
    %v1062 = vld [vmem:[#allocation7 + $0x40] sm:$0xf]
    %v1063 = vld [vmem:[#allocation7 + $0x44] sm:$0xf]
    %v1064 = vld [vmem:[#allocation7 + $0x48] sm:$0xf]
    %v1065 = vld [vmem:[#allocation7 + $0x4c] sm:$0xf]
    %v1066 = vld [vmem:[#allocation7 + $0x50] sm:$0xf]
    %v1067 = vld [vmem:[#allocation7 + $0x54] sm:$0xf]
    %v1068 = vld [vmem:[#allocation7 + $0x58] sm:$0xf]
    %v1069 = vld [vmem:[#allocation7 + $0x5c] sm:$0xf]
    %v1070 = vld [vmem:[#allocation7 + $0x60] sm:$0xf]
    %v1071 = vld [vmem:[#allocation7 + $0x64] sm:$0xf]
    %v1072 = vld [vmem:[#allocation7 + $0x68] sm:$0xf]
    %v1073 = vld [vmem:[#allocation7 + $0x6c] sm:$0xf]
    %v1074 = vld [vmem:[#allocation7 + $0x70] sm:$0xf]
    %v1075 = vld [vmem:[#allocation7 + $0x74] sm:$0xf]
    %v1076 = vld [vmem:[#allocation7 + $0x78] sm:$0xf]
    %v1077 = vld [vmem:[#allocation7 + $0x7c] sm:$0xf]
    %v1079 = vperm.slane %v1043, 0
    %v1113 = vunpack.c.l.b16 %v1046
    %v1114 = vunpack.c.l.b16 %v1047
    %v1115 = vunpack.c.l.b16 %v1048
    %v1116 = vunpack.c.l.b16 %v1049
    %v1117 = vunpack.c.l.b16 %v1050
    %v1118 = vunpack.c.l.b16 %v1051
    %v1119 = vunpack.c.l.b16 %v1052
    %v1120 = vunpack.c.l.b16 %v1053
    %v1121 = vunpack.c.l.b16 %v1054
    %v1122 = vunpack.c.l.b16 %v1055
    %v1123 = vunpack.c.l.b16 %v1056
    %v1124 = vunpack.c.l.b16 %v1057
    %v1125 = vunpack.c.l.b16 %v1058
    %v1126 = vunpack.c.l.b16 %v1059
    %v1127 = vunpack.c.l.b16 %v1060
    %v1128 = vunpack.c.l.b16 %v1061
    %v1129 = vunpack.c.l.b16 %v1062
    %v1130 = vunpack.c.l.b16 %v1063
    %v1131 = vunpack.c.l.b16 %v1064
    %v1132 = vunpack.c.l.b16 %v1065
    %v1133 = vunpack.c.l.b16 %v1066
    %v1134 = vunpack.c.l.b16 %v1067
    %v1135 = vunpack.c.l.b16 %v1068
    %v1136 = vunpack.c.l.b16 %v1069
    %v1137 = vunpack.c.l.b16 %v1070
    %v1138 = vunpack.c.l.b16 %v1071
    %v1139 = vunpack.c.l.b16 %v1072
    %v1140 = vunpack.c.l.b16 %v1073
    %v1141 = vunpack.c.l.b16 %v1074
    %v1142 = vunpack.c.l.b16 %v1075
    %v1143 = vunpack.c.l.b16 %v1076
    %v1144 = vunpack.c.l.b16 %v1077
    %v1145 = vpack.c.b16 %v1114, %v1113
    %v1146 = vpack.c.b16 %v1116, %v1115
    %v1147 = vpack.c.b16 %v1118, %v1117
    %v1148 = vpack.c.b16 %v1120, %v1119
    %v1149 = vpack.c.b16 %v1122, %v1121
    %v1150 = vpack.c.b16 %v1124, %v1123
    %v1151 = vpack.c.b16 %v1126, %v1125
    %v1152 = vpack.c.b16 %v1128, %v1127
    %v1153 = vpack.c.b16 %v1130, %v1129
    %v1154 = vpack.c.b16 %v1132, %v1131
    %v1155 = vpack.c.b16 %v1134, %v1133
    %v1156 = vpack.c.b16 %v1136, %v1135
    %v1157 = vpack.c.b16 %v1138, %v1137
    %v1158 = vpack.c.b16 %v1140, %v1139
    %v1159 = vpack.c.b16 %v1142, %v1141
    %v1160 = vpack.c.b16 %v1144, %v1143
    %1177 = vmatpush.bf16.msra.mxu0 %v1152
    %1178 = vmatpush.bf16.msra.mxu0 %v1151
    %1179 = vmatpush.bf16.msra.mxu0 %v1150
    %1180 = vmatpush.bf16.msra.mxu0 %v1149
    %1181 = vmatpush.bf16.msra.mxu0 %v1148
    %1182 = vmatpush.bf16.msra.mxu0 %v1147
    %1183 = vmatpush.bf16.msra.mxu0 %v1146
    %1184 = vmatpush.bf16.msra.mxu0 %v1145
    %1185 = vmatmul.bf16.gmra.mxu0 %v1044
    %v1186 = vpop.f32.mrf.mxu0
    %v1187 = vadd.f32 %v1079, %v1186
    %v1188 = vpop.f32.mrf.mxu0
    %v1189 = vadd.f32 %v1079, %v1188
    %1190 = vdwg.mxu0
    %1191 = vmatpush.bf16.msra.mxu0 %v1160
    %1192 = vmatpush.bf16.msra.mxu0 %v1159
    %1193 = vmatpush.bf16.msra.mxu0 %v1158
    %1194 = vmatpush.bf16.msra.mxu0 %v1157
    %1195 = vmatpush.bf16.msra.mxu0 %v1156
    %1196 = vmatpush.bf16.msra.mxu0 %v1155
    %1197 = vmatpush.bf16.msra.mxu0 %v1154
    %1198 = vmatpush.bf16.msra.mxu0 %v1153
    %1199 = vmatmul.bf16.gmra.mxu0 %v1045
    %v1200 = vpop.f32.mrf.mxu0
    %v1201 = vadd.f32 %v1187, %v1200
    %v1202 = vpop.f32.mrf.mxu0
    %v1203 = vadd.f32 %v1189, %v1202
    %1204 = vdwg.mxu0
    %1205 = vmax.xlane.f32.xlu0 %v1201
    %v1206 = vpop.xlane.xlu0 %1205
    %1207 = vmax.xlane.f32.xlu0 %v1203
    %v1208 = vpop.xlane.xlu0 %1207
    %v1209 = vsub.f32 %v1201, %v1206
    %v1210 = vsub.f32 %v1203, %v1208
    %v1211 = vmul.f32 %v1209, 1.442695
    %v1212 = vpow.pop %v1211
    %v1213 = vmul.f32 %v1210, 1.442695
    %v1214 = vpow.pop %v1213
    %1215 = vadd.xlane.f32.xlu0 %v1212
    %v1216 = vpop.xlane.xlu0 %1215
    %1217 = vadd.xlane.f32.xlu0 %v1214
    %v1218 = vpop.xlane.xlu0 %1217
    %v1219 = vrcp.pop %v1216
    %v1220 = vmul.f32 %v1216, %v1219
    %v1221 = vsub.f32 1.0, %v1220
    %v1222 = vmul.f32 %v1219, %v1221
    %v1223 = vadd.f32 %v1219, %v1222
    %vm1224 = vweird.f32 %v1216
    %vm1225 = vweird.f32 %v1219
    %vm1226 = vmor %vm1224, %vm1225
    %v1227 = vsel %vm1226, %v1219, %v1223
    %v1228 = vand.u32 2147483647, %v1216
    %vm1229 = vcmp.eq.f32.partialorder %v1228, 8.507059e+37
    %v1230 = vand.u32 %v1216, 2147483648
    %v1231 = vor.u32 1.1754944e-38, %v1230
    %v1232 = vsel %vm1229, %v1231, %v1227
    %v1233 = vmul.f32 1.0, %v1232
    %v1234 = vrcp.pop %v1218
    %v1235 = vmul.f32 %v1218, %v1234
    %v1236 = vsub.f32 1.0, %v1235
    %v1237 = vmul.f32 %v1234, %v1236
    %v1238 = vadd.f32 %v1234, %v1237
    %vm1239 = vweird.f32 %v1218
    %vm1240 = vweird.f32 %v1234
    %vm1241 = vmor %vm1239, %vm1240
    %v1242 = vsel %vm1241, %v1234, %v1238
    %v1243 = vand.u32 2147483647, %v1218
    %vm1244 = vcmp.eq.f32.partialorder %v1243, 8.507059e+37
    %v1245 = vand.u32 %v1218, 2147483648
    %v1246 = vor.u32 1.1754944e-38, %v1245
    %v1247 = vsel %vm1244, %v1246, %v1242
    %v1248 = vmul.f32 1.0, %v1247
    %v1249 = vmul.f32 %v1212, %v1233
    %v1250 = vmul.f32 %v1214, %v1248
    %1251 = vst [vmem:[%s7] sm:$0xff] %v1249
    %1252 = vst [vmem:[%s7 + $0x8] sm:$0xff] %v1250
    // Predicated region
    $region46: #{dqn_forward_pallas.1} parent=1 // pred_check
      _
    $region47: #{dqn_forward_pallas.1} parent=1 // pred_check_branch
      %1254 = sbr.rel (0) target = $region49
    $region48: #{dqn_forward_pallas.1} parent=1 // pred_region
      _
    $region49: #{dqn_forward_pallas.1} parent=1 // pred_fallthru
      _
    // Predicated region
    $region50: #{dqn_forward_pallas.1} parent=1 // pred_check
      _
    $region51: #{dqn_forward_pallas.1} parent=1 // pred_check_branch
      %1256 = sbr.rel (0) target = $region53
    $region52: #{dqn_forward_pallas.1} parent=1 // pred_region
      _
    $region53: #{dqn_forward_pallas.1} parent=1 // pred_fallthru
      _
    %1257 = vsyncpa [#allocation3], 1
    %1258 = vsyncpa [#allocation5], 1
    %1259 = vsyncpa [#allocation8], 1

</llo_original>
